<compile_context>
chip_gen: v5e
topology: v5e:2x2
jax: 0.10.0
libtpu: 0.0.40
codegen_flags: <defaults>
</compile_context>

<pallas_src>
import functools

import jax
import jax.numpy as jnp
from jax.experimental import pallas as pl
from jax.experimental.pallas import tpu as pltpu


def _swish_kernel(x_ref, o_ref, *, beta, compute_dtype):
    # Pure elementwise: VPU mul/add + one EUP tanh per element.
    x = x_ref[...].astype(compute_dtype)
    z = x if beta == 1.0 else x * beta                 # skip the mul when beta == 1
    sig = 0.5 * jnp.tanh(0.5 * z) + 0.5                # sigmoid(z), single transcendental
    o_ref[...] = (x * sig).astype(o_ref.dtype)


def _tpu_generation():
    """Best-effort TPU generation from device_kind; 0 if unknown (tuning only)."""
    try:
        kind = jax.devices()[0].device_kind.lower()
    except Exception:
        return 0
    for gen in (7, 6, 5, 4):
        if f"v{gen}" in kind or f"tpu{gen}" in kind:
            return gen
    return 0


def _default_block_bytes(gen):
    if gen >= 7:
        return 6 << 20   # 4 bufs x 6 MiB = 24 MiB, under v7x's 32 MiB scoped default
    if gen == 6:
        return 4 << 20   # 4 bufs x 4 MiB = 16 MiB, under v6e's 32 MiB scoped default
    return 2 << 20       # v5e: overhead already hidden at ~820 GB/s; stay well under 16 MiB


def swish(x, beta: float = 1.0, *, block_bytes: int | None = None):
    """Swish activation via Pallas. Elementwise, any rank/shape."""
    orig_shape = x.shape
    orig_dtype = x.dtype
    total = int(x.size)
    if total == 0:
        return x
    itemsize = jnp.dtype(orig_dtype).itemsize

    gen = _tpu_generation()
    if block_bytes is None:
        block_bytes = _default_block_bytes(gen)

    # 16-bit floats compute natively on v6e/v7x (bf16 VPU/EUP); f32 otherwise.
    if itemsize == 2 and jnp.issubdtype(orig_dtype, jnp.floating) and gen >= 6:
        compute_dtype = orig_dtype
    else:
        compute_dtype = jnp.float32

    flat = x.reshape(-1)
    tail = total % 128           # rare ragged remainder, handled outside the kernel
    main = total - tail

    out_parts = []

    if main > 0:
        # ---- lane-dense 2D view of the 128-aligned body ----
        lane = 128
        for cand in (2048, 1024, 512, 256):
            if main % cand == 0:
                lane = cand
                break
        x2d = (flat if tail == 0 else flat[:main]).reshape(-1, lane)
        rows = x2d.shape[0]

        # Row tile: ~block_bytes per buffer, multiple of the sublane packing factor.
        pack = max(8, 32 // itemsize)          # 8 for f32, 16 for bf16/f16, 32 for int8
        tm = max(pack, block_bytes // (lane * itemsize))
        tm = (tm // pack) * pack
        if rows <= tm:
            if rows < 2 * pack:
                tm = rows                      # full extent: always a legal block shape
            else:
                # Split into >= 2 blocks so both v7x TensorCores get work.
                tm = pl.cdiv(pl.cdiv(rows, 2), pack) * pack
        grid = (pl.cdiv(rows, tm),)            # ragged last block masked by Pallas

        kernel = functools.partial(
            _swish_kernel, beta=float(beta), compute_dtype=compute_dtype)

        out2d = pl.pallas_call(
            kernel,
            out_shape=jax.ShapeDtypeStruct(x2d.shape, orig_dtype),
            grid_spec=pltpu.PrefetchScalarGridSpec(
                num_scalar_prefetch=0,
                grid=grid,
                in_specs=[pl.BlockSpec((tm, lane), lambda i: (i, 0))],
                out_specs=pl.BlockSpec((tm, lane), lambda i: (i, 0)),
            ),
            compiler_params=pltpu.CompilerParams(
                dimension_semantics=("parallel",)),
            cost_estimate=pl.CostEstimate(
                flops=4 * main,
                transcendentals=main,
                bytes_accessed=2 * main * itemsize),
        )(x2d)
        out_parts.append(out2d.reshape(-1))

    if tail > 0:
        # <128-element tail: plain JAX (far cheaper than a full-tensor pad + slice).
        xt = flat[main:].astype(compute_dtype)
        zt = xt if float(beta) == 1.0 else xt * float(beta)
        out_parts.append((xt * (0.5 * jnp.tanh(0.5 * zt) + 0.5)).astype(orig_dtype))

    out_flat = out_parts[0] if len(out_parts) == 1 else jnp.concatenate(out_parts)
    return out_flat.reshape(orig_shape)


if __name__ == "__main__":
    key = jax.random.PRNGKey(0)
    # NCHW input, matching the PyTorch conv-style convention.
    x = jax.random.normal(key, (2, 4, 16, 16), dtype=jnp.float32)

    beta = 1.0  # constant beta, as in the module default
    y = jax.block_until_ready(swish(x, beta=beta))

    # Reference check in plain JAX.
    y_ref = x * jax.nn.sigmoid(beta * x)
    assert y.shape == x.shape and y.dtype == x.dtype
    assert jnp.allclose(y, y_ref, atol=2e-6, rtol=2e-6)

    # Exercise the ragged path (total % 128 != 0) and a non-unit beta as well.
    x2 = jax.random.normal(jax.random.PRNGKey(1), (5, 7, 13), dtype=jnp.float32)
    y2 = jax.block_until_ready(swish(x2, beta=0.75))
    y2_ref = x2 * jax.nn.sigmoid(0.75 * x2)
    assert jnp.allclose(y2, y2_ref, atol=2e-6, rtol=2e-6)

    print("KERNEL_OK")
</pallas_src>

<mosaic_0001>
module attributes {stable_mosaic.version = 11 : i64} {
  func.func @_swish_kernel(%arg0: i32, %arg1: memref<1x2048xf32, #tpu.memory_space<vmem>>, %arg2: memref<1x2048xf32, #tpu.memory_space<vmem>>) attributes {dimension_semantics = [#tpu.dimension_semantics<parallel>], iteration_bounds = array<i64: 1>, scalar_prefetch = 0 : i64, scratch_operands = 0 : i64, tpu.core_type = #tpu.core_type<tc>, window_params = [{transform_indices = @transform_0, window_bounds = array<i64: 1, 2048>}, {transform_indices = @transform_1, window_bounds = array<i64: 1, 2048>}]} {
    %c0 = arith.constant 0 : index
    %c0_0 = arith.constant 0 : index
    %0 = vector.load %arg1[%c0, %c0_0] : memref<1x2048xf32, #tpu.memory_space<vmem>>, vector<1x2048xf32>
    %cst = arith.constant 5.000000e-01 : f32
    %1 = vector.broadcast %cst : f32 to vector<1x2048xf32>
    %2 = arith.mulf %1, %0 : vector<1x2048xf32>
    %3 = math.tanh %2 : vector<1x2048xf32>
    %cst_1 = arith.constant 5.000000e-01 : f32
    %4 = vector.broadcast %cst_1 : f32 to vector<1x2048xf32>
    %5 = arith.mulf %4, %3 : vector<1x2048xf32>
    %cst_2 = arith.constant 5.000000e-01 : f32
    %6 = vector.broadcast %cst_2 : f32 to vector<1x2048xf32>
    %7 = arith.addf %5, %6 : vector<1x2048xf32>
    %8 = arith.mulf %0, %7 : vector<1x2048xf32>
    %c0_3 = arith.constant 0 : index
    %c0_4 = arith.constant 0 : index
    %9 = vector.load %arg2[%c0_3, %c0_4] : memref<1x2048xf32, #tpu.memory_space<vmem>>, vector<1x2048xf32>
    tpu.vector_store %arg2[%c0_3, %c0_4], %8 {strides = array<i32>} : memref<1x2048xf32, #tpu.memory_space<vmem>>, vector<1x2048xf32>,
    return
  }
  func.func @transform_0(%arg0: i32) -> (i32, i32) {
    %c0_i32 = arith.constant 0 : i32
    %c0_i32_0 = arith.constant 0 : i32
    return %arg0, %c0_i32 : i32, i32
  }
  func.func @transform_1(%arg0: i32) -> (i32, i32) {
    %c0_i32 = arith.constant 0 : i32
    %c0_i32_0 = arith.constant 0 : i32
    return %arg0, %c0_i32 : i32, i32
  }
}

</mosaic_0001>

<llo_original>
// kernel: tpu_custom_call.1
$region0: #{tpu_custom_call.1}
  #allocation0 [shape = 'u32[]', space=smem, size = 0x4, offset = 0x4, fixed_abs, tag = 'smem constant byte address 0x4 - core index']
  #allocation1 [shape = 'u32[72,128]{1,0:T(1,128)}', space=vmem, size = 0x9000, scoped, tag = 'internal scratch']
  %s0 = inlined_call_operand.hbm [shape: f32[1,2048], index: 0, kind: input, shape index: {}]
  %s1 = inlined_call_operand.hbm [shape: f32[1,2048], index: 1, kind: output, shape index: {}]
  %s2 = sld [smem:[#allocation0]]
  $region18: #{tpu_custom_call.1} parent=0
    _
  %s4 = ssub.s32 1, %s2
  %s5 = scalar_select 0, %s4, %s2
  $region1: #{tpu_custom_call.1} parent=0
    #allocation2 [shape = 'u8[8192]{0}', space=vmem, size = 0x2000, scoped, tag = 'input window, operand 0, single buffered']
    #allocation3 [shape = 's32[1]{0}', space=sflag, size = 0x4, scoped, tag = 'scoped memory for tpu_custom_call.1']
    #allocation4 [shape = 's32[1]{0}', space=sflag, size = 0x4, scoped, tag = 'scoped memory for tpu_custom_call.1']
    #allocation5 [shape = 'u8[8192]{0}', space=vmem, size = 0x2000, scoped, tag = 'output window, operand 0, single buffered']
    %6 = vsyncpa [#allocation3], 0
    %7 = vsyncpa [#allocation4], 0
    // Predicated region
    $region2: #{tpu_custom_call.1} parent=1 // pred_check
      _
    $region3: #{tpu_custom_call.1} parent=1 // pred_check_branch
      %9 = sbr.rel (0) target = $region5
    $region4: #{tpu_custom_call.1} parent=1 // pred_region
      %11 = vsyncadd [#allocation3], 0
      %s13 = sshll.u32 %s0, 4
      %s14 = int_to_ptr.hbm [resolvable:$true] %s13
      %s15 = sshll.u32 [#allocation2], 4
      %s16 = int_to_ptr.vmem [resolvable:$true] %s15
      %18 = dma.hbm_to_vmem [thread:$0]  %s14, 256, %s16, [#allocation3]
    $region5: #{tpu_custom_call.1} parent=1 // pred_fallthru
      _
    // Predicated region
    $region6: #{tpu_custom_call.1} parent=1 // pred_check
      _
    $region7: #{tpu_custom_call.1} parent=1 // pred_check_branch
      %20 = sbr.rel (0) target = $region9
    $region8: #{tpu_custom_call.1} parent=1 // pred_region
      %22 = dma.done [#allocation3], 256
    $region9: #{tpu_custom_call.1} parent=1 // pred_fallthru
      _
    %v23 = vld [vmem:[#allocation2] sm:$0xff]
    %v24 = vld [vmem:[#allocation2 + $0x8] sm:$0xff]
    %v25 = vmul.f32 %v23, 0.5
    %v26 = vmul.f32 %v24, 0.5
    %v27 = vtanh.pop %v25
    %v28 = vtanh.pop %v26
    %v29 = vmul.f32 %v27, 0.5
    %v30 = vmul.f32 %v28, 0.5
    %v31 = vadd.f32 %v29, 0.5
    %v32 = vadd.f32 %v30, 0.5
    %v33 = vmul.f32 %v23, %v31
    %v34 = vmul.f32 %v24, %v32
    %35 = vst [vmem:[#allocation5] sm:$0xff] %v33
    %36 = vst [vmem:[#allocation5 + $0x8] sm:$0xff] %v34
    // Predicated region
    $region10: #{tpu_custom_call.1} parent=1 // pred_check
      _
    $region11: #{tpu_custom_call.1} parent=1 // pred_check_branch
      %38 = sbr.rel (0) target = $region13
    $region12: #{tpu_custom_call.1} parent=1 // pred_region
      %40 = vsyncadd [#allocation4], 0
      %s42 = sshll.u32 [#allocation5], 4
      %s43 = int_to_ptr.vmem [resolvable:$true] %s42
      %s44 = sshll.u32 %s1, 4
      %s45 = int_to_ptr.hbm [resolvable:$true] %s44
      %47 = dma.vmem_to_hbm [thread:$0]  %s43, 256, %s45, [#allocation4]
    $region13: #{tpu_custom_call.1} parent=1 // pred_fallthru
      _
    // Predicated region
    $region14: #{tpu_custom_call.1} parent=1 // pred_check
      _
    $region15: #{tpu_custom_call.1} parent=1 // pred_check_branch
      %49 = sbr.rel (0) target = $region17
    $region16: #{tpu_custom_call.1} parent=1 // pred_region
      %51 = dma.done [#allocation4], 256
    $region17: #{tpu_custom_call.1} parent=1 // pred_fallthru
      _
    %52 = vsyncpa [#allocation3], 1
    %53 = vsyncpa [#allocation4], 1

</llo_original>
